<compile_context>
chip_gen: v5e
topology: v5e:2x2
jax: 0.10.0
libtpu: 0.0.40
codegen_flags: <defaults>
</compile_context>

<pallas_src>
import jax
import jax.numpy as jnp
from jax.experimental import pallas as pl
from jax.experimental.pallas import tpu as pltpu

# ---- Module hyper-parameters (consistent with run_model's column usage) ----
IN1, OUT1 = 5, 2           # input_size1, output_size1
IN2, OUT2 = 3, 2           # input_size2, output_size2
LAYERS = [40, 40, 40, 40]  # hidden layers for both nets (default)
N_LAYERS = len(LAYERS) + 1 # 5 Linear layers per net

XDIM = IN1 + IN2           # 8  : width of x
ODIM = OUT1 + OUT2         # 4  : width of the concatenated output
H = LAYERS[0]              # 40 : hidden width (and packing pad size)
N_W = 11                   # packed weight slabs (net1: 5, net2: 6 incl. split L0)
N_B = 10                   # packed bias rows


def fused_mlp_kernel(x_ref, w_ref, b_ref, out_ref):
    """Whole forward pass fused.  x_ref: [TB, 8], w_ref: [11,40,40] (packed,
    zero-padded slabs), b_ref: [10,1,40], out_ref: [TB, 4]."""
    f32 = jnp.float32
    x = x_ref[...]                                                  # [TB, 8]

    # Hoisted x-only contribution of net2 layer 0 (independent of net1 chain).
    h2x = jnp.dot(x, w_ref[5, :XDIM, :], preferred_element_type=f32)

    # ---- net1 ----
    # Layer 0 weight is zero-padded over the x2 columns, so full-x matmul is exact.
    h = jnp.dot(x, w_ref[0, :XDIM, :], preferred_element_type=f32) + b_ref[0]
    h = jnp.maximum(h, 0.0)
    for i in range(1, N_LAYERS - 1):
        h = jnp.dot(h, w_ref[i], preferred_element_type=f32) + b_ref[i]
        h = jnp.maximum(h, 0.0)
    # Final net1 layer: real weights live in output columns 0:OUT1, rest zero.
    y1f = jnp.dot(h, w_ref[4], preferred_element_type=f32) + b_ref[4]   # [TB,40]

    # ---- net2 ----
    # Layer 0 = x-part (hoisted) + y1-part (slab has real rows only at 0:OUT1,
    # and y1f is zero outside columns 0:OUT1, so this equals y1 @ w2b exactly).
    h = h2x + jnp.dot(y1f, w_ref[6], preferred_element_type=f32) + b_ref[5]
    h = jnp.maximum(h, 0.0)
    for i in range(1, N_LAYERS - 1):
        h = jnp.dot(h, w_ref[6 + i], preferred_element_type=f32) + b_ref[5 + i]
        h = jnp.maximum(h, 0.0)
    # Final net2 layer: real weights live in output columns OUT1:OUT1+OUT2.
    y2f = jnp.dot(h, w_ref[10], preferred_element_type=f32) + b_ref[9]  # [TB,40]

    # y1f and y2f occupy disjoint columns -> their sum is concat(y1, y2).
    out_ref[...] = (y1f + y2f)[:, :ODIM]                                # single store


def make_params(key):
    """Deterministic PyTorch-Linear-style init (uniform +-1/sqrt(fan_in)).
    Weights returned as [in, out]; biases as [out]."""
    def linear(key, fan_in, fan_out):
        kw, kb = jax.random.split(key)
        bound = 1.0 / jnp.sqrt(jnp.float32(fan_in))
        w = jax.random.uniform(kw, (fan_in, fan_out), jnp.float32, -bound, bound)
        b = jax.random.uniform(kb, (fan_out,), jnp.float32, -bound, bound)
        return w, b

    dims1 = [IN1] + LAYERS + [OUT1]
    dims2 = [IN1 + IN2 + OUT1] + LAYERS + [OUT2]
    w1s, b1s, w2s, b2s = [], [], [], []
    keys = jax.random.split(key, 2 * N_LAYERS)
    for i in range(N_LAYERS):
        w, b = linear(keys[i], dims1[i], dims1[i + 1])
        w1s.append(w); b1s.append(b)
    for i in range(N_LAYERS):
        w, b = linear(keys[N_LAYERS + i], dims2[i], dims2[i + 1])
        w2s.append(w); b2s.append(b)
    return w1s, b1s, w2s, b2s


def pack_params(w1s, b1s, w2s, b2s):
    """Pack all parameters into two zero-padded stacks (done once, off the hot path).

    Weight slab layout ([N_W, H, H]):
      0      : net1 L0   (rows 0:IN1 real; rows IN1:XDIM zero so full-x matmul is exact)
      1..3   : net1 L1..L3
      4      : net1 L4   (cols 0:OUT1 real -> y1 lands in output cols 0:OUT1)
      5      : net2 L0, x part   (rows 0:XDIM real)
      6      : net2 L0, y1 part  (rows 0:OUT1 real)
      7..9   : net2 L1..L3
      10     : net2 L4   (cols OUT1:ODIM real -> y2 lands in output cols OUT1:ODIM)
    Bias layout ([N_B, 1, H]): 0..4 net1, 5..9 net2 (last biases placed in the
    same output columns as their weights).
    """
    W = jnp.zeros((N_W, H, H), jnp.float32)
    B = jnp.zeros((N_B, 1, H), jnp.float32)

    # net1
    W = W.at[0, :IN1, :].set(w1s[0])
    for i in range(1, N_LAYERS - 1):
        W = W.at[i].set(w1s[i])
    W = W.at[4, :, :OUT1].set(w1s[4])
    for i in range(N_LAYERS - 1):
        B = B.at[i, 0, :].set(b1s[i])
    B = B.at[4, 0, :OUT1].set(b1s[4])

    # net2 (layer 0 pre-split into x part and y1 part)
    W = W.at[5, :XDIM, :].set(w2s[0][:XDIM, :])
    W = W.at[6, :OUT1, :].set(w2s[0][XDIM:, :])
    for i in range(1, N_LAYERS - 1):
        W = W.at[6 + i].set(w2s[i])
    W = W.at[10, :, OUT1:ODIM].set(w2s[4])
    for i in range(N_LAYERS - 1):
        B = B.at[5 + i, 0, :].set(b2s[i])
    B = B.at[9, 0, OUT1:ODIM].set(b2s[4])
    return W, B


def neural_network_forward(x, w_stack, b_stack, *, block_b=1024):
    B = x.shape[0]
    tb = B if B <= block_b else block_b
    pad = (-B) % tb
    if pad:
        x = jnp.pad(x, ((0, pad), (0, 0)))
    Bp = B + pad
    grid = (Bp // tb,)

    out = pl.pallas_call(
        fused_mlp_kernel,
        out_shape=jax.ShapeDtypeStruct((Bp, ODIM), jnp.float32),
        grid_spec=pltpu.PrefetchScalarGridSpec(
            num_scalar_prefetch=0,
            grid=grid,
            in_specs=[
                pl.BlockSpec((tb, XDIM), lambda i: (i, 0)),
                pl.BlockSpec((N_W, H, H), lambda i: (0, 0, 0)),   # weights resident
                pl.BlockSpec((N_B, 1, H), lambda i: (0, 0, 0)),   # biases resident
            ],
            out_specs=pl.BlockSpec((tb, ODIM), lambda i: (i, 0)),
        ),
        compiler_params=pltpu.CompilerParams(
            dimension_semantics=("parallel",)),
    )(x, w_stack, b_stack)
    return out[:B] if pad else out


def reference_forward(x, w1s, b1s, w2s, b2s):
    def mlp(h, ws, bs):
        for i in range(len(ws)):
            h = h @ ws[i] + bs[i]
            if i < len(ws) - 1:
                h = jnp.maximum(h, 0.0)
        return h
    y1 = mlp(x[:, :IN1], w1s, b1s)
    x2 = jnp.concatenate([x, y1], axis=1)
    y2 = mlp(x2, w2s, b2s)
    return jnp.concatenate([y1, y2], axis=1)


if __name__ == "__main__":
    key = jax.random.PRNGKey(0)
    kx, kp = jax.random.split(key)

    B = 8
    x = jax.random.normal(kx, (B, XDIM), dtype=jnp.float32)
    w1s, b1s, w2s, b2s = make_params(kp)
    w_stack, b_stack = pack_params(w1s, b1s, w2s, b2s)

    forward = jax.jit(neural_network_forward)
    out = forward(x, w_stack, b_stack)
    out = jax.block_until_ready(out)

    ref = reference_forward(x, w1s, b1s, w2s, b2s)
    assert out.shape == (B, ODIM)
    assert jnp.allclose(out, ref, atol=1e-5, rtol=1e-5), "mismatch vs reference"

    print("KERNEL_OK")
</pallas_src>

<mosaic_0001>
module attributes {stable_mosaic.version = 11 : i64} {
  func.func @fused_mlp_kernel(%arg0: i32, %arg1: memref<8x8xf32, #tpu.memory_space<vmem>>, %arg2: memref<11x40x40xf32, #tpu.memory_space<vmem>>, %arg3: memref<10x1x40xf32, #tpu.memory_space<vmem>>, %arg4: memref<8x4xf32, #tpu.memory_space<vmem>>) attributes {dimension_semantics = [#tpu.dimension_semantics<parallel>], iteration_bounds = array<i64: 1>, scalar_prefetch = 0 : i64, scratch_operands = 0 : i64, tpu.core_type = #tpu.core_type<tc>, window_params = [{transform_indices = @transform_0, window_bounds = array<i64: 8, 8>}, {pipeline_mode = #tpu.pipeline_mode<synchronous>, transform_indices = @transform_1, window_bounds = array<i64: 11, 40, 40>}, {pipeline_mode = #tpu.pipeline_mode<synchronous>, transform_indices = @transform_2, window_bounds = array<i64: 10, 1, 40>}, {transform_indices = @transform_3, window_bounds = array<i64: 8, 4>}]} {
    %c0 = arith.constant 0 : index
    %c0_0 = arith.constant 0 : index
    %0 = vector.load %arg1[%c0, %c0_0] : memref<8x8xf32, #tpu.memory_space<vmem>>, vector<8x8xf32>
    %c5 = arith.constant 5 : index
    %c0_1 = arith.constant 0 : index
    %c0_2 = arith.constant 0 : index
    %1 = vector.load %arg2[%c5, %c0_1, %c0_2] : memref<11x40x40xf32, #tpu.memory_space<vmem>>, vector<1x8x40xf32>
    %2 = vector.shape_cast %1 : vector<1x8x40xf32> to vector<8x40xf32>
    %cst = arith.constant dense<0.000000e+00> : vector<8x40xf32>
    %3 = tpu.matmul %0, %2, %cst {dimension_numbers = #tpu.dot_dimension_numbers<[1], [0], [0], [1], [0, 0, 1, 1], [], []>} : vector<8x8xf32>, vector<8x40xf32>, vector<8x40xf32> -> vector<8x40xf32>
    %c0_3 = arith.constant 0 : index
    %c0_4 = arith.constant 0 : index
    %c0_5 = arith.constant 0 : index
    %4 = vector.load %arg2[%c0_3, %c0_4, %c0_5] : memref<11x40x40xf32, #tpu.memory_space<vmem>>, vector<1x8x40xf32>
    %5 = vector.shape_cast %4 : vector<1x8x40xf32> to vector<8x40xf32>
    %cst_6 = arith.constant dense<0.000000e+00> : vector<8x40xf32>
    %6 = tpu.matmul %0, %5, %cst_6 {dimension_numbers = #tpu.dot_dimension_numbers<[1], [0], [0], [1], [0, 0, 1, 1], [], []>} : vector<8x8xf32>, vector<8x40xf32>, vector<8x40xf32> -> vector<8x40xf32>
    %c0_7 = arith.constant 0 : index
    %c0_8 = arith.constant 0 : index
    %c0_9 = arith.constant 0 : index
    %7 = vector.load %arg3[%c0_7, %c0_8, %c0_9] : memref<10x1x40xf32, #tpu.memory_space<vmem>>, vector<1x1x40xf32>
    %8 = vector.shape_cast %7 : vector<1x1x40xf32> to vector<1x40xf32>
    %9 = vector.broadcast %8 : vector<1x40xf32> to vector<8x40xf32>
    %10 = arith.addf %6, %9 : vector<8x40xf32>
    %cst_10 = arith.constant 0.000000e+00 : f32
    %11 = vector.broadcast %cst_10 : f32 to vector<8x40xf32>
    %12 = arith.maximumf %10, %11 : vector<8x40xf32>
    %c1 = arith.constant 1 : index
    %c0_11 = arith.constant 0 : index
    %c0_12 = arith.constant 0 : index
    %13 = vector.load %arg2[%c1, %c0_11, %c0_12] : memref<11x40x40xf32, #tpu.memory_space<vmem>>, vector<1x40x40xf32>
    %14 = vector.shape_cast %13 : vector<1x40x40xf32> to vector<40x40xf32>
    %cst_13 = arith.constant dense<0.000000e+00> : vector<8x40xf32>
    %15 = tpu.matmul %12, %14, %cst_13 {dimension_numbers = #tpu.dot_dimension_numbers<[1], [0], [0], [1], [0, 0, 1, 1], [], []>} : vector<8x40xf32>, vector<40x40xf32>, vector<8x40xf32> -> vector<8x40xf32>
    %c1_14 = arith.constant 1 : index
    %c0_15 = arith.constant 0 : index
    %c0_16 = arith.constant 0 : index
    %16 = vector.load %arg3[%c1_14, %c0_15, %c0_16] : memref<10x1x40xf32, #tpu.memory_space<vmem>>, vector<1x1x40xf32>
    %17 = vector.shape_cast %16 : vector<1x1x40xf32> to vector<1x40xf32>
    %18 = vector.broadcast %17 : vector<1x40xf32> to vector<8x40xf32>
    %19 = arith.addf %15, %18 : vector<8x40xf32>
    %cst_17 = arith.constant 0.000000e+00 : f32
    %20 = vector.broadcast %cst_17 : f32 to vector<8x40xf32>
    %21 = arith.maximumf %19, %20 : vector<8x40xf32>
    %c2 = arith.constant 2 : index
    %c0_18 = arith.constant 0 : index
    %c0_19 = arith.constant 0 : index
    %22 = vector.load %arg2[%c2, %c0_18, %c0_19] : memref<11x40x40xf32, #tpu.memory_space<vmem>>, vector<1x40x40xf32>
    %23 = vector.shape_cast %22 : vector<1x40x40xf32> to vector<40x40xf32>
    %cst_20 = arith.constant dense<0.000000e+00> : vector<8x40xf32>
    %24 = tpu.matmul %21, %23, %cst_20 {dimension_numbers = #tpu.dot_dimension_numbers<[1], [0], [0], [1], [0, 0, 1, 1], [], []>} : vector<8x40xf32>, vector<40x40xf32>, vector<8x40xf32> -> vector<8x40xf32>
    %c2_21 = arith.constant 2 : index
    %c0_22 = arith.constant 0 : index
    %c0_23 = arith.constant 0 : index
    %25 = vector.load %arg3[%c2_21, %c0_22, %c0_23] : memref<10x1x40xf32, #tpu.memory_space<vmem>>, vector<1x1x40xf32>
    %26 = vector.shape_cast %25 : vector<1x1x40xf32> to vector<1x40xf32>
    %27 = vector.broadcast %26 : vector<1x40xf32> to vector<8x40xf32>
    %28 = arith.addf %24, %27 : vector<8x40xf32>
    %cst_24 = arith.constant 0.000000e+00 : f32
    %29 = vector.broadcast %cst_24 : f32 to vector<8x40xf32>
    %30 = arith.maximumf %28, %29 : vector<8x40xf32>
    %c3 = arith.constant 3 : index
    %c0_25 = arith.constant 0 : index
    %c0_26 = arith.constant 0 : index
    %31 = vector.load %arg2[%c3, %c0_25, %c0_26] : memref<11x40x40xf32, #tpu.memory_space<vmem>>, vector<1x40x40xf32>
    %32 = vector.shape_cast %31 : vector<1x40x40xf32> to vector<40x40xf32>
    %cst_27 = arith.constant dense<0.000000e+00> : vector<8x40xf32>
    %33 = tpu.matmul %30, %32, %cst_27 {dimension_numbers = #tpu.dot_dimension_numbers<[1], [0], [0], [1], [0, 0, 1, 1], [], []>} : vector<8x40xf32>, vector<40x40xf32>, vector<8x40xf32> -> vector<8x40xf32>
    %c3_28 = arith.constant 3 : index
    %c0_29 = arith.constant 0 : index
    %c0_30 = arith.constant 0 : index
    %34 = vector.load %arg3[%c3_28, %c0_29, %c0_30] : memref<10x1x40xf32, #tpu.memory_space<vmem>>, vector<1x1x40xf32>
    %35 = vector.shape_cast %34 : vector<1x1x40xf32> to vector<1x40xf32>
    %36 = vector.broadcast %35 : vector<1x40xf32> to vector<8x40xf32>
    %37 = arith.addf %33, %36 : vector<8x40xf32>
    %cst_31 = arith.constant 0.000000e+00 : f32
    %38 = vector.broadcast %cst_31 : f32 to vector<8x40xf32>
    %39 = arith.maximumf %37, %38 : vector<8x40xf32>
    %c4 = arith.constant 4 : index
    %c0_32 = arith.constant 0 : index
    %c0_33 = arith.constant 0 : index
    %40 = vector.load %arg2[%c4, %c0_32, %c0_33] : memref<11x40x40xf32, #tpu.memory_space<vmem>>, vector<1x40x40xf32>
    %41 = vector.shape_cast %40 : vector<1x40x40xf32> to vector<40x40xf32>
    %cst_34 = arith.constant dense<0.000000e+00> : vector<8x40xf32>
    %42 = tpu.matmul %39, %41, %cst_34 {dimension_numbers = #tpu.dot_dimension_numbers<[1], [0], [0], [1], [0, 0, 1, 1], [], []>} : vector<8x40xf32>, vector<40x40xf32>, vector<8x40xf32> -> vector<8x40xf32>
    %c4_35 = arith.constant 4 : index
    %c0_36 = arith.constant 0 : index
    %c0_37 = arith.constant 0 : index
    %43 = vector.load %arg3[%c4_35, %c0_36, %c0_37] : memref<10x1x40xf32, #tpu.memory_space<vmem>>, vector<1x1x40xf32>
    %44 = vector.shape_cast %43 : vector<1x1x40xf32> to vector<1x40xf32>
    %45 = vector.broadcast %44 : vector<1x40xf32> to vector<8x40xf32>
    %46 = arith.addf %42, %45 : vector<8x40xf32>
    %c6 = arith.constant 6 : index
    %c0_38 = arith.constant 0 : index
    %c0_39 = arith.constant 0 : index
    %47 = vector.load %arg2[%c6, %c0_38, %c0_39] : memref<11x40x40xf32, #tpu.memory_space<vmem>>, vector<1x40x40xf32>
    %48 = vector.shape_cast %47 : vector<1x40x40xf32> to vector<40x40xf32>
    %cst_40 = arith.constant dense<0.000000e+00> : vector<8x40xf32>
    %49 = tpu.matmul %46, %48, %cst_40 {dimension_numbers = #tpu.dot_dimension_numbers<[1], [0], [0], [1], [0, 0, 1, 1], [], []>} : vector<8x40xf32>, vector<40x40xf32>, vector<8x40xf32> -> vector<8x40xf32>
    %50 = arith.addf %3, %49 : vector<8x40xf32>
    %c5_41 = arith.constant 5 : index
    %c0_42 = arith.constant 0 : index
    %c0_43 = arith.constant 0 : index
    %51 = vector.load %arg3[%c5_41, %c0_42, %c0_43] : memref<10x1x40xf32, #tpu.memory_space<vmem>>, vector<1x1x40xf32>
    %52 = vector.shape_cast %51 : vector<1x1x40xf32> to vector<1x40xf32>
    %53 = vector.broadcast %52 : vector<1x40xf32> to vector<8x40xf32>
    %54 = arith.addf %50, %53 : vector<8x40xf32>
    %cst_44 = arith.constant 0.000000e+00 : f32
    %55 = vector.broadcast %cst_44 : f32 to vector<8x40xf32>
    %56 = arith.maximumf %54, %55 : vector<8x40xf32>
    %c7 = arith.constant 7 : index
    %c0_45 = arith.constant 0 : index
    %c0_46 = arith.constant 0 : index
    %57 = vector.load %arg2[%c7, %c0_45, %c0_46] : memref<11x40x40xf32, #tpu.memory_space<vmem>>, vector<1x40x40xf32>
    %58 = vector.shape_cast %57 : vector<1x40x40xf32> to vector<40x40xf32>
    %cst_47 = arith.constant dense<0.000000e+00> : vector<8x40xf32>
    %59 = tpu.matmul %56, %58, %cst_47 {dimension_numbers = #tpu.dot_dimension_numbers<[1], [0], [0], [1], [0, 0, 1, 1], [], []>} : vector<8x40xf32>, vector<40x40xf32>, vector<8x40xf32> -> vector<8x40xf32>
    %c6_48 = arith.constant 6 : index
    %c0_49 = arith.constant 0 : index
    %c0_50 = arith.constant 0 : index
    %60 = vector.load %arg3[%c6_48, %c0_49, %c0_50] : memref<10x1x40xf32, #tpu.memory_space<vmem>>, vector<1x1x40xf32>
    %61 = vector.shape_cast %60 : vector<1x1x40xf32> to vector<1x40xf32>
    %62 = vector.broadcast %61 : vector<1x40xf32> to vector<8x40xf32>
    %63 = arith.addf %59, %62 : vector<8x40xf32>
    %cst_51 = arith.constant 0.000000e+00 : f32
    %64 = vector.broadcast %cst_51 : f32 to vector<8x40xf32>
    %65 = arith.maximumf %63, %64 : vector<8x40xf32>
    %c8 = arith.constant 8 : index
    %c0_52 = arith.constant 0 : index
    %c0_53 = arith.constant 0 : index
    %66 = vector.load %arg2[%c8, %c0_52, %c0_53] : memref<11x40x40xf32, #tpu.memory_space<vmem>>, vector<1x40x40xf32>
    %67 = vector.shape_cast %66 : vector<1x40x40xf32> to vector<40x40xf32>
    %cst_54 = arith.constant dense<0.000000e+00> : vector<8x40xf32>
    %68 = tpu.matmul %65, %67, %cst_54 {dimension_numbers = #tpu.dot_dimension_numbers<[1], [0], [0], [1], [0, 0, 1, 1], [], []>} : vector<8x40xf32>, vector<40x40xf32>, vector<8x40xf32> -> vector<8x40xf32>
    %c7_55 = arith.constant 7 : index
    %c0_56 = arith.constant 0 : index
    %c0_57 = arith.constant 0 : index
    %69 = vector.load %arg3[%c7_55, %c0_56, %c0_57] : memref<10x1x40xf32, #tpu.memory_space<vmem>>, vector<1x1x40xf32>
    %70 = vector.shape_cast %69 : vector<1x1x40xf32> to vector<1x40xf32>
    %71 = vector.broadcast %70 : vector<1x40xf32> to vector<8x40xf32>
    %72 = arith.addf %68, %71 : vector<8x40xf32>
    %cst_58 = arith.constant 0.000000e+00 : f32
    %73 = vector.broadcast %cst_58 : f32 to vector<8x40xf32>
    %74 = arith.maximumf %72, %73 : vector<8x40xf32>
    %c9 = arith.constant 9 : index
    %c0_59 = arith.constant 0 : index
    %c0_60 = arith.constant 0 : index
    %75 = vector.load %arg2[%c9, %c0_59, %c0_60] : memref<11x40x40xf32, #tpu.memory_space<vmem>>, vector<1x40x40xf32>
    %76 = vector.shape_cast %75 : vector<1x40x40xf32> to vector<40x40xf32>
    %cst_61 = arith.constant dense<0.000000e+00> : vector<8x40xf32>
    %77 = tpu.matmul %74, %76, %cst_61 {dimension_numbers = #tpu.dot_dimension_numbers<[1], [0], [0], [1], [0, 0, 1, 1], [], []>} : vector<8x40xf32>, vector<40x40xf32>, vector<8x40xf32> -> vector<8x40xf32>
    %c8_62 = arith.constant 8 : index
    %c0_63 = arith.constant 0 : index
    %c0_64 = arith.constant 0 : index
    %78 = vector.load %arg3[%c8_62, %c0_63, %c0_64] : memref<10x1x40xf32, #tpu.memory_space<vmem>>, vector<1x1x40xf32>
    %79 = vector.shape_cast %78 : vector<1x1x40xf32> to vector<1x40xf32>
    %80 = vector.broadcast %79 : vector<1x40xf32> to vector<8x40xf32>
    %81 = arith.addf %77, %80 : vector<8x40xf32>
    %cst_65 = arith.constant 0.000000e+00 : f32
    %82 = vector.broadcast %cst_65 : f32 to vector<8x40xf32>
    %83 = arith.maximumf %81, %82 : vector<8x40xf32>
    %c10 = arith.constant 10 : index
    %c0_66 = arith.constant 0 : index
    %c0_67 = arith.constant 0 : index
    %84 = vector.load %arg2[%c10, %c0_66, %c0_67] : memref<11x40x40xf32, #tpu.memory_space<vmem>>, vector<1x40x40xf32>
    %85 = vector.shape_cast %84 : vector<1x40x40xf32> to vector<40x40xf32>
    %cst_68 = arith.constant dense<0.000000e+00> : vector<8x40xf32>
    %86 = tpu.matmul %83, %85, %cst_68 {dimension_numbers = #tpu.dot_dimension_numbers<[1], [0], [0], [1], [0, 0, 1, 1], [], []>} : vector<8x40xf32>, vector<40x40xf32>, vector<8x40xf32> -> vector<8x40xf32>
    %c9_69 = arith.constant 9 : index
    %c0_70 = arith.constant 0 : index
    %c0_71 = arith.constant 0 : index
    %87 = vector.load %arg3[%c9_69, %c0_70, %c0_71] : memref<10x1x40xf32, #tpu.memory_space<vmem>>, vector<1x1x40xf32>
    %88 = vector.shape_cast %87 : vector<1x1x40xf32> to vector<1x40xf32>
    %89 = vector.broadcast %88 : vector<1x40xf32> to vector<8x40xf32>
    %90 = arith.addf %86, %89 : vector<8x40xf32>
    %91 = arith.addf %46, %90 : vector<8x40xf32>
    %92 = vector.extract_strided_slice %91 {offsets = [0, 0], sizes = [8, 4], strides = [1, 1]} : vector<8x40xf32> to vector<8x4xf32>
    %c0_72 = arith.constant 0 : index
    %c0_73 = arith.constant 0 : index
    %93 = vector.load %arg4[%c0_72, %c0_73] : memref<8x4xf32, #tpu.memory_space<vmem>>, vector<8x4xf32>
    tpu.vector_store %arg4[%c0_72, %c0_73], %92 {strides = array<i32>} : memref<8x4xf32, #tpu.memory_space<vmem>>, vector<8x4xf32>,
    return
  }
  func.func @transform_0(%arg0: i32) -> (i32, i32) {
    %c0_i32 = arith.constant 0 : i32
    %c0_i32_0 = arith.constant 0 : i32
    return %arg0, %c0_i32 : i32, i32
  }
  func.func @transform_1(%arg0: i32) -> (i32, i32, i32) {
    %c0_i32 = arith.constant 0 : i32
    %c0_i32_0 = arith.constant 0 : i32
    %c0_i32_1 = arith.constant 0 : i32
    %c0_i32_2 = arith.constant 0 : i32
    return %c0_i32, %c0_i32_0, %c0_i32_1 : i32, i32, i32
  }
  func.func @transform_2(%arg0: i32) -> (i32, i32, i32) {
    %c0_i32 = arith.constant 0 : i32
    %c0_i32_0 = arith.constant 0 : i32
    %c0_i32_1 = arith.constant 0 : i32
    %c0_i32_2 = arith.constant 0 : i32
    return %c0_i32, %c0_i32_0, %c0_i32_1 : i32, i32, i32
  }
  func.func @transform_3(%arg0: i32) -> (i32, i32) {
    %c0_i32 = arith.constant 0 : i32
    %c0_i32_0 = arith.constant 0 : i32
    return %arg0, %c0_i32 : i32, i32
  }
}

</mosaic_0001>

<llo_original>
// kernel: neural_network_forward.1
$region0: #{neural_network_forward.1}
  #allocation0 [shape = 'u32[]', space=smem, size = 0x4, offset = 0x4, fixed_abs, tag = 'smem constant byte address 0x4 - core index']
  #allocation1 [shape = 'u32[72,128]{1,0:T(1,128)}', space=vmem, size = 0x9000, scoped, tag = 'internal scratch']
  %s0 = inlined_call_operand.hbm [shape: f32[8,8], index: 0, kind: input, shape index: {}]
  %s1 = inlined_call_operand.hbm [shape: f32[11,40,40], index: 1, kind: input, shape index: {}]
  %s2 = inlined_call_operand.hbm [shape: f32[10,1,40], index: 2, kind: input, shape index: {}]
  %s3 = inlined_call_operand.vmem [shape: f32[8,4], index: 3, kind: output, shape index: {}]
  %s4 = sld [smem:[#allocation0]]
  $region34: #{neural_network_forward.1} parent=0
    _
  %s6 = ssub.s32 1, %s4
  %s7 = scalar_select 0, %s6, %s4
  $region1: #{neural_network_forward.1} parent=0
    #allocation2 [shape = 'u8[4096]{0}', space=vmem, size = 0x1000, scoped, tag = 'input window, operand 0, single buffered']
    #allocation3 [shape = 's32[1]{0}', space=sflag, size = 0x4, scoped, tag = 'scoped memory for neural_network_forward.1']
    #allocation4 [shape = 'u8[225280]{0}', space=vmem, size = 0x37000, scoped, tag = 'input window, operand 1, single buffered']
    #allocation5 [shape = 's32[1]{0}', space=sflag, size = 0x4, scoped, tag = 'scoped memory for neural_network_forward.1']
    #allocation6 [shape = 'u8[5120]{0}', space=vmem, size = 0x1400, scoped, tag = 'input window, operand 2, single buffered']
    %8 = vsyncpa [#allocation3], 0
    %9 = vsyncpa [#allocation5], 0
    // Predicated region
    $region2: #{neural_network_forward.1} parent=1 // pred_check
      _
    $region3: #{neural_network_forward.1} parent=1 // pred_check_branch
      %11 = sbr.rel (0) target = $region5
    $region4: #{neural_network_forward.1} parent=1 // pred_region
      %13 = vsyncadd [#allocation3], 0
      %s15 = sshll.u32 %s0, 4
      %s16 = int_to_ptr.hbm [resolvable:$true] %s15
      %s17 = sshll.u32 [#allocation2], 4
      %s18 = int_to_ptr.vmem [resolvable:$true] %s17
      %20 = dma.hbm_to_vmem [thread:$0]  %s16, 128, %s18, [#allocation3]
    $region5: #{neural_network_forward.1} parent=1 // pred_fallthru
      _
    // Predicated region
    $region6: #{neural_network_forward.1} parent=1 // pred_check
      _
    $region7: #{neural_network_forward.1} parent=1 // pred_check_branch
      %22 = sbr.rel (0) target = $region9
    $region8: #{neural_network_forward.1} parent=1 // pred_region
      %24 = vsyncadd [#allocation5], 0
      %s25 = sshll.u32 %s1, 4
      %s26 = int_to_ptr.hbm [resolvable:$true] %s25
      %s27 = sshll.u32 [#allocation4], 4
      %s28 = int_to_ptr.vmem [resolvable:$true] %s27
      %33 = dma.hbm_to_vmem [thread:$0]  %s26, 7040, %s28, [#allocation5], 128, 128, 8
    $region9: #{neural_network_forward.1} parent=1 // pred_fallthru
      _
    // Predicated region
    $region10: #{neural_network_forward.1} parent=1 // pred_check
      _
    $region11: #{neural_network_forward.1} parent=1 // pred_check_branch
      %35 = sbr.rel (0) target = $region13
    $region12: #{neural_network_forward.1} parent=1 // pred_region
      %37 = vsyncadd [#allocation5], 0
      %s38 = sshll.u32 %s2, 4
      %s39 = int_to_ptr.hbm [resolvable:$true] %s38
      %s40 = sshll.u32 [#allocation6], 4
      %s41 = int_to_ptr.vmem [resolvable:$true] %s40
      %46 = dma.hbm_to_vmem [thread:$0]  %s39, 160, %s41, [#allocation5], 16, 16, 1
    $region13: #{neural_network_forward.1} parent=1 // pred_fallthru
      _
    // Predicated region
    $region14: #{neural_network_forward.1} parent=1 // pred_check
      _
    $region15: #{neural_network_forward.1} parent=1 // pred_check_branch
      %48 = sbr.rel (0) target = $region17
    $region16: #{neural_network_forward.1} parent=1 // pred_region
      %50 = dma.done [#allocation3], 128
    $region17: #{neural_network_forward.1} parent=1 // pred_fallthru
      _
    // Predicated region
    $region18: #{neural_network_forward.1} parent=1 // pred_check
      _
    $region19: #{neural_network_forward.1} parent=1 // pred_check_branch
      %52 = sbr.rel (0) target = $region21
    $region20: #{neural_network_forward.1} parent=1 // pred_region
      %54 = dma.done [#allocation5], 7040
    $region21: #{neural_network_forward.1} parent=1 // pred_fallthru
      _
    // Predicated region
    $region22: #{neural_network_forward.1} parent=1 // pred_check
      _
    $region23: #{neural_network_forward.1} parent=1 // pred_check_branch
      %56 = sbr.rel (0) target = $region25
    $region24: #{neural_network_forward.1} parent=1 // pred_region
      %58 = dma.done [#allocation5], 160
    $region25: #{neural_network_forward.1} parent=1 // pred_fallthru
      _
    %v59 = vld [vmem:[#allocation2] sm:$0xff]
    %s60 = scalar_lea.vmem [#allocation4], 200
    %v61 = vld [vmem:[%s60] sm:$0xff]
    %v62 = vld [vmem:[#allocation4] sm:$0xff]
    %v63 = vld [vmem:[#allocation6] sm:$0x1]
    %v65 = vperm.slane %v63, 0
    %vm67 = vcmask 64512
    %v69 = vsel %vm67, %v59, 0
    %71 = vmatpush.msra.mxu0 0.0
    %72 = vmatpush.msra.mxu0 0.0
    %73 = vmatpush.msra.mxu0 0.0
    %74 = vmatpush.msra.mxu0 0.0
    %75 = vmatpush.msra.mxu0 0.0
    %76 = vmatpush.msra.mxu0 0.0
    %77 = vmatpush.msra.mxu0 0.0
    %78 = vmatpush.msra.mxu0 0.0
    %79 = vmatpush.msra.mxu0 0.0
    %80 = vmatpush.msra.mxu0 0.0
    %81 = vmatpush.msra.mxu0 0.0
    %82 = vmatpush.msra.mxu0 0.0
    %83 = vmatpush.msra.mxu0 0.0
    %84 = vmatpush.msra.mxu0 0.0
    %85 = vmatpush.msra.mxu0 0.0
    %86 = vmatpush.msra.mxu0 %v62
    %87 = vmatmul.f32.gmra.mxu0 %v69
    %v88 = vpop.f32.mrf.mxu0
    %v89 = vadd.f32 %v65, %v88
    %90 = vdwg.mxu0
    %v91 = vmax.f32 %v89, 0.0
    %s92 = scalar_lea.vmem [#allocation4], 40
    %v93 = vld [vmem:[%s92] sm:$0xff]
    %v94 = vld [vmem:[%s92 + $0x8] sm:$0xff]
    %v95 = vld [vmem:[%s92 + $0x10] sm:$0xff]
    %v96 = vld [vmem:[%s92 + $0x18] sm:$0xff]
    %v97 = vld [vmem:[%s92 + $0x20] sm:$0xff]
    %s98 = scalar_lea.vmem [#allocation6], 1
    %v99 = vld [vmem:[%s98] sm:$0x1]
    %v101 = vperm.slane %v99, 0
    %vm103 = vcmask 326656
    %v105 = vsel %vm103, %v91, 0
    %107 = vmatpush.msra.mxu0 0.0
    %108 = vmatpush.msra.mxu0 0.0
    %109 = vmatpush.msra.mxu0 0.0
    %110 = vmatpush.msra.mxu0 0.0
    %111 = vmatpush.msra.mxu0 0.0
    %112 = vmatpush.msra.mxu0 0.0
    %113 = vmatpush.msra.mxu0 0.0
    %114 = vmatpush.msra.mxu0 0.0
    %115 = vmatpush.msra.mxu0 0.0
    %116 = vmatpush.msra.mxu0 0.0
    %117 = vmatpush.msra.mxu0 0.0
    %118 = vmatpush.msra.mxu0 %v97
    %119 = vmatpush.msra.mxu0 %v96
    %120 = vmatpush.msra.mxu0 %v95
    %121 = vmatpush.msra.mxu0 %v94
    %122 = vmatpush.msra.mxu0 %v93
    %123 = vmatmul.f32.gmra.mxu0 %v105
    %v124 = vpop.f32.mrf.mxu0
    %v125 = vadd.f32 %v101, %v124
    %126 = vdwg.mxu0
    %v127 = vmax.f32 %v125, 0.0
    %s128 = scalar_lea.vmem [#allocation4], 80
    %v129 = vld [vmem:[%s128] sm:$0xff]
    %v130 = vld [vmem:[%s128 + $0x8] sm:$0xff]
    %v131 = vld [vmem:[%s128 + $0x10] sm:$0xff]
    %v132 = vld [vmem:[%s128 + $0x18] sm:$0xff]
    %v133 = vld [vmem:[%s128 + $0x20] sm:$0xff]
    %s134 = scalar_lea.vmem [#allocation6], 2
    %v135 = vld [vmem:[%s134] sm:$0x1]
    %v137 = vperm.slane %v135, 0
    %v140 = vsel %vm103, %v127, 0
    %142 = vmatpush.msra.mxu0 0.0
    %143 = vmatpush.msra.mxu0 0.0
    %144 = vmatpush.msra.mxu0 0.0
    %145 = vmatpush.msra.mxu0 0.0
    %146 = vmatpush.msra.mxu0 0.0
    %147 = vmatpush.msra.mxu0 0.0
    %148 = vmatpush.msra.mxu0 0.0
    %149 = vmatpush.msra.mxu0 0.0
    %150 = vmatpush.msra.mxu0 0.0
    %151 = vmatpush.msra.mxu0 0.0
    %152 = vmatpush.msra.mxu0 0.0
    %153 = vmatpush.msra.mxu0 %v133
    %154 = vmatpush.msra.mxu0 %v132
    %155 = vmatpush.msra.mxu0 %v131
    %156 = vmatpush.msra.mxu0 %v130
    %157 = vmatpush.msra.mxu0 %v129
    %158 = vmatmul.f32.gmra.mxu0 %v140
    %v159 = vpop.f32.mrf.mxu0
    %v160 = vadd.f32 %v137, %v159
    %161 = vdwg.mxu0
    %v162 = vmax.f32 %v160, 0.0
    %s163 = scalar_lea.vmem [#allocation4], 120
    %v164 = vld [vmem:[%s163] sm:$0xff]
    %v165 = vld [vmem:[%s163 + $0x8] sm:$0xff]
    %v166 = vld [vmem:[%s163 + $0x10] sm:$0xff]
    %v167 = vld [vmem:[%s163 + $0x18] sm:$0xff]
    %v168 = vld [vmem:[%s163 + $0x20] sm:$0xff]
    %s169 = scalar_lea.vmem [#allocation6], 3
    %v170 = vld [vmem:[%s169] sm:$0x1]
    %v172 = vperm.slane %v170, 0
    %v175 = vsel %vm103, %v162, 0
    %177 = vmatpush.msra.mxu0 0.0
    %178 = vmatpush.msra.mxu0 0.0
    %179 = vmatpush.msra.mxu0 0.0
    %180 = vmatpush.msra.mxu0 0.0
    %181 = vmatpush.msra.mxu0 0.0
    %182 = vmatpush.msra.mxu0 0.0
    %183 = vmatpush.msra.mxu0 0.0
    %184 = vmatpush.msra.mxu0 0.0
    %185 = vmatpush.msra.mxu0 0.0
    %186 = vmatpush.msra.mxu0 0.0
    %187 = vmatpush.msra.mxu0 0.0
    %188 = vmatpush.msra.mxu0 %v168
    %189 = vmatpush.msra.mxu0 %v167
    %190 = vmatpush.msra.mxu0 %v166
    %191 = vmatpush.msra.mxu0 %v165
    %192 = vmatpush.msra.mxu0 %v164
    %193 = vmatmul.f32.gmra.mxu0 %v175
    %v194 = vpop.f32.mrf.mxu0
    %v195 = vadd.f32 %v172, %v194
    %196 = vdwg.mxu0
    %v197 = vmax.f32 %v195, 0.0
    %s198 = scalar_lea.vmem [#allocation4], 160
    %v199 = vld [vmem:[%s198] sm:$0xff]
    %v200 = vld [vmem:[%s198 + $0x8] sm:$0xff]
    %v201 = vld [vmem:[%s198 + $0x10] sm:$0xff]
    %v202 = vld [vmem:[%s198 + $0x18] sm:$0xff]
    %v203 = vld [vmem:[%s198 + $0x20] sm:$0xff]
    %s204 = scalar_lea.vmem [#allocation6], 4
    %v205 = vld [vmem:[%s204] sm:$0x1]
    %v207 = vperm.slane %v205, 0
    %v210 = vsel %vm103, %v197, 0
    %212 = vmatpush.msra.mxu0 0.0
    %213 = vmatpush.msra.mxu0 0.0
    %214 = vmatpush.msra.mxu0 0.0
    %215 = vmatpush.msra.mxu0 0.0
    %216 = vmatpush.msra.mxu0 0.0
    %217 = vmatpush.msra.mxu0 0.0
    %218 = vmatpush.msra.mxu0 0.0
    %219 = vmatpush.msra.mxu0 0.0
    %220 = vmatpush.msra.mxu0 0.0
    %221 = vmatpush.msra.mxu0 0.0
    %222 = vmatpush.msra.mxu0 0.0
    %223 = vmatpush.msra.mxu0 %v203
    %224 = vmatpush.msra.mxu0 %v202
    %225 = vmatpush.msra.mxu0 %v201
    %226 = vmatpush.msra.mxu0 %v200
    %227 = vmatpush.msra.mxu0 %v199
    %228 = vmatmul.f32.gmra.mxu0 %v210
    %v229 = vpop.f32.mrf.mxu0
    %v230 = vadd.f32 %v207, %v229
    %231 = vdwg.mxu0
    %s232 = scalar_lea.vmem [#allocation4], 240
    %v233 = vld [vmem:[%s232] sm:$0xff]
    %v234 = vld [vmem:[%s232 + $0x8] sm:$0xff]
    %v235 = vld [vmem:[%s232 + $0x10] sm:$0xff]
    %v236 = vld [vmem:[%s232 + $0x18] sm:$0xff]
    %v237 = vld [vmem:[%s232 + $0x20] sm:$0xff]
    %v239 = vsel %vm103, %v230, 0
    %241 = vmatpush.msra.mxu0 0.0
    %242 = vmatpush.msra.mxu0 0.0
    %243 = vmatpush.msra.mxu0 0.0
    %244 = vmatpush.msra.mxu0 0.0
    %245 = vmatpush.msra.mxu0 0.0
    %246 = vmatpush.msra.mxu0 0.0
    %247 = vmatpush.msra.mxu0 0.0
    %248 = vmatpush.msra.mxu0 0.0
    %249 = vmatpush.msra.mxu0 0.0
    %250 = vmatpush.msra.mxu0 0.0
    %251 = vmatpush.msra.mxu0 0.0
    %252 = vmatpush.msra.mxu0 %v237
    %253 = vmatpush.msra.mxu0 %v236
    %254 = vmatpush.msra.mxu0 %v235
    %255 = vmatpush.msra.mxu0 %v234
    %256 = vmatpush.msra.mxu0 %v233
    %257 = vmatmul.f32.gmra.mxu0 %v239
    %v258 = vpop.f32.mrf.mxu0
    %v259 = vadd.f32 0.0, %v258
    %260 = vdwg.mxu0
    %261 = vmatpush.msra.mxu0 0.0
    %262 = vmatpush.msra.mxu0 0.0
    %263 = vmatpush.msra.mxu0 0.0
    %264 = vmatpush.msra.mxu0 0.0
    %265 = vmatpush.msra.mxu0 0.0
    %266 = vmatpush.msra.mxu0 0.0
    %267 = vmatpush.msra.mxu0 0.0
    %268 = vmatpush.msra.mxu0 0.0
    %269 = vmatpush.msra.mxu0 0.0
    %270 = vmatpush.msra.mxu0 0.0
    %271 = vmatpush.msra.mxu0 0.0
    %272 = vmatpush.msra.mxu0 0.0
    %273 = vmatpush.msra.mxu0 0.0
    %274 = vmatpush.msra.mxu0 0.0
    %275 = vmatpush.msra.mxu0 0.0
    %276 = vmatpush.msra.mxu0 %v61
    %277 = vmatmul.f32.gmra.mxu0 %v69
    %v278 = vpop.f32.mrf.mxu0
    %v279 = vadd.f32 %v259, %v278
    %280 = vdwg.mxu0
    %s281 = scalar_lea.vmem [#allocation6], 5
    %v282 = vld [vmem:[%s281] sm:$0x1]
    %v284 = vperm.slane %v282, 0
    %v286 = vadd.f32 %v279, %v284
    %v287 = vmax.f32 %v286, 0.0
    %s288 = scalar_lea.vmem [#allocation4], 280
    %v289 = vld [vmem:[%s288] sm:$0xff]
    %v290 = vld [vmem:[%s288 + $0x8] sm:$0xff]
    %v291 = vld [vmem:[%s288 + $0x10] sm:$0xff]
    %v292 = vld [vmem:[%s288 + $0x18] sm:$0xff]
    %v293 = vld [vmem:[%s288 + $0x20] sm:$0xff]
    %s294 = scalar_lea.vmem [#allocation6], 6
    %v295 = vld [vmem:[%s294] sm:$0x1]
    %v297 = vperm.slane %v295, 0
    %v300 = vsel %vm103, %v287, 0
    %302 = vmatpush.msra.mxu0 0.0
    %303 = vmatpush.msra.mxu0 0.0
    %304 = vmatpush.msra.mxu0 0.0
    %305 = vmatpush.msra.mxu0 0.0
    %306 = vmatpush.msra.mxu0 0.0
    %307 = vmatpush.msra.mxu0 0.0
    %308 = vmatpush.msra.mxu0 0.0
    %309 = vmatpush.msra.mxu0 0.0
    %310 = vmatpush.msra.mxu0 0.0
    %311 = vmatpush.msra.mxu0 0.0
    %312 = vmatpush.msra.mxu0 0.0
    %313 = vmatpush.msra.mxu0 %v293
    %314 = vmatpush.msra.mxu0 %v292
    %315 = vmatpush.msra.mxu0 %v291
    %316 = vmatpush.msra.mxu0 %v290
    %317 = vmatpush.msra.mxu0 %v289
    %318 = vmatmul.f32.gmra.mxu0 %v300
    %v319 = vpop.f32.mrf.mxu0
    %v320 = vadd.f32 %v297, %v319
    %321 = vdwg.mxu0
    %v322 = vmax.f32 %v320, 0.0
    %s323 = scalar_lea.vmem [#allocation4], 320
    %v324 = vld [vmem:[%s323] sm:$0xff]
    %v325 = vld [vmem:[%s323 + $0x8] sm:$0xff]
    %v326 = vld [vmem:[%s323 + $0x10] sm:$0xff]
    %v327 = vld [vmem:[%s323 + $0x18] sm:$0xff]
    %v328 = vld [vmem:[%s323 + $0x20] sm:$0xff]
    %s329 = scalar_lea.vmem [#allocation6], 7
    %v330 = vld [vmem:[%s329] sm:$0x1]
    %v332 = vperm.slane %v330, 0
    %v335 = vsel %vm103, %v322, 0
    %337 = vmatpush.msra.mxu0 0.0
    %338 = vmatpush.msra.mxu0 0.0
    %339 = vmatpush.msra.mxu0 0.0
    %340 = vmatpush.msra.mxu0 0.0
    %341 = vmatpush.msra.mxu0 0.0
    %342 = vmatpush.msra.mxu0 0.0
    %343 = vmatpush.msra.mxu0 0.0
    %344 = vmatpush.msra.mxu0 0.0
    %345 = vmatpush.msra.mxu0 0.0
    %346 = vmatpush.msra.mxu0 0.0
    %347 = vmatpush.msra.mxu0 0.0
    %348 = vmatpush.msra.mxu0 %v328
    %349 = vmatpush.msra.mxu0 %v327
    %350 = vmatpush.msra.mxu0 %v326
    %351 = vmatpush.msra.mxu0 %v325
    %352 = vmatpush.msra.mxu0 %v324
    %353 = vmatmul.f32.gmra.mxu0 %v335
    %v354 = vpop.f32.mrf.mxu0
    %v355 = vadd.f32 %v332, %v354
    %356 = vdwg.mxu0
    %v357 = vmax.f32 %v355, 0.0
    %s358 = scalar_lea.vmem [#allocation4], 360
    %v359 = vld [vmem:[%s358] sm:$0xff]
    %v360 = vld [vmem:[%s358 + $0x8] sm:$0xff]
    %v361 = vld [vmem:[%s358 + $0x10] sm:$0xff]
    %v362 = vld [vmem:[%s358 + $0x18] sm:$0xff]
    %v363 = vld [vmem:[%s358 + $0x20] sm:$0xff]
    %s364 = scalar_lea.vmem [#allocation6], 8
    %v365 = vld [vmem:[%s364] sm:$0x1]
    %v367 = vperm.slane %v365, 0
    %v370 = vsel %vm103, %v357, 0
    %372 = vmatpush.msra.mxu0 0.0
    %373 = vmatpush.msra.mxu0 0.0
    %374 = vmatpush.msra.mxu0 0.0
    %375 = vmatpush.msra.mxu0 0.0
    %376 = vmatpush.msra.mxu0 0.0
    %377 = vmatpush.msra.mxu0 0.0
    %378 = vmatpush.msra.mxu0 0.0
    %379 = vmatpush.msra.mxu0 0.0
    %380 = vmatpush.msra.mxu0 0.0
    %381 = vmatpush.msra.mxu0 0.0
    %382 = vmatpush.msra.mxu0 0.0
    %383 = vmatpush.msra.mxu0 %v363
    %384 = vmatpush.msra.mxu0 %v362
    %385 = vmatpush.msra.mxu0 %v361
    %386 = vmatpush.msra.mxu0 %v360
    %387 = vmatpush.msra.mxu0 %v359
    %388 = vmatmul.f32.gmra.mxu0 %v370
    %v389 = vpop.f32.mrf.mxu0
    %v390 = vadd.f32 %v367, %v389
    %391 = vdwg.mxu0
    %v392 = vmax.f32 %v390, 0.0
    %s393 = scalar_lea.vmem [#allocation4], 400
    %v394 = vld [vmem:[%s393] sm:$0xff]
    %v395 = vld [vmem:[%s393 + $0x8] sm:$0xff]
    %v396 = vld [vmem:[%s393 + $0x10] sm:$0xff]
    %v397 = vld [vmem:[%s393 + $0x18] sm:$0xff]
    %v398 = vld [vmem:[%s393 + $0x20] sm:$0xff]
    %s399 = scalar_lea.vmem [#allocation6], 9
    %v400 = vld [vmem:[%s399] sm:$0x1]
    %v402 = vperm.slane %v400, 0
    %v405 = vsel %vm103, %v392, 0
    %407 = vmatpush.msra.mxu0 0.0
    %408 = vmatpush.msra.mxu0 0.0
    %409 = vmatpush.msra.mxu0 0.0
    %410 = vmatpush.msra.mxu0 0.0
    %411 = vmatpush.msra.mxu0 0.0
    %412 = vmatpush.msra.mxu0 0.0
    %413 = vmatpush.msra.mxu0 0.0
    %414 = vmatpush.msra.mxu0 0.0
    %415 = vmatpush.msra.mxu0 0.0
    %416 = vmatpush.msra.mxu0 0.0
    %417 = vmatpush.msra.mxu0 0.0
    %418 = vmatpush.msra.mxu0 %v398
    %419 = vmatpush.msra.mxu0 %v397
    %420 = vmatpush.msra.mxu0 %v396
    %421 = vmatpush.msra.mxu0 %v395
    %422 = vmatpush.msra.mxu0 %v394
    %423 = vmatmul.f32.gmra.mxu0 %v405
    %v424 = vpop.f32.mrf.mxu0
    %v425 = vadd.f32 %v402, %v424
    %426 = vdwg.mxu0
    %v427 = vadd.f32 %v230, %v425
    %vm428 = vcmask 31744
    %429 = vst.msk [vmem:[%s3] sm:$0xff] %vm428, %v427
    // Predicated region
    $region26: #{neural_network_forward.1} parent=1 // pred_check
      _
    $region27: #{neural_network_forward.1} parent=1 // pred_check_branch
      %431 = sbr.rel (0) target = $region29
    $region28: #{neural_network_forward.1} parent=1 // pred_region
      _
    $region29: #{neural_network_forward.1} parent=1 // pred_fallthru
      _
    // Predicated region
    $region30: #{neural_network_forward.1} parent=1 // pred_check
      _
    $region31: #{neural_network_forward.1} parent=1 // pred_check_branch
      %433 = sbr.rel (0) target = $region33
    $region32: #{neural_network_forward.1} parent=1 // pred_region
      _
    $region33: #{neural_network_forward.1} parent=1 // pred_fallthru
      _
    %434 = vsyncpa [#allocation3], 1
    %435 = vsyncpa [#allocation5], 1

</llo_original>
